<compile_context>
chip_gen: v6e
topology: v6e:2x2x1
jax: 0.10.0
libtpu: 0.0.40
codegen_flags: <defaults>
</compile_context>

<pallas_src>
import functools
import math

import jax
import jax.numpy as jnp
from jax.experimental import pallas as pl
from jax.experimental.pallas import tpu as pltpu


# TODO(synk): `utils.get_bond_vocab_dims()` is not provided; use a fixed set of
# 4 small bond-attribute vocab sizes consistent with the (E, 4) input shape.
def get_bond_vocab_dims():
    return [5, 6, 2, 3]


def _round_up(x, m):
    return ((x + m - 1) // m) * m


def _bond_embed_kernel(idx_ref, w_ref, out_ref, *, slots, vp):
    """One fused one-hot x weight MXU matmul per tile.

    idx_ref : (TB, slots) int32  -- slots = P*A packed attribute columns;
                                    slot j owns one-hot lanes [j*vp, (j+1)*vp)
    w_ref   : (slots*vp, OW) f32 -- block-structured combined weight
    out_ref : (TB, OW) f32       -- OW is a multiple of 128 (lane-dense store)
    """
    idx = idx_ref[...]                               # (TB, slots)
    tb = idx.shape[0]
    total = slots * vp
    lanes = jax.lax.broadcasted_iota(jnp.int32, (tb, total), 1)
    onehot = jnp.zeros((tb, total), jnp.float32)
    # Slot lane-ranges are disjoint, so one select per slot builds the fused
    # one-hot exactly (VPU filler; MXU matmul / output store are the binders).
    for j in range(slots):
        tgt = idx[:, j : j + 1] + j * vp             # (TB, 1), broadcasts over lanes
        onehot = jnp.where(tgt == lanes, 1.0, onehot)
    out_ref[...] = jnp.dot(
        onehot, w_ref[...], preferred_element_type=jnp.float32
    ).astype(out_ref.dtype)


@functools.partial(jax.jit, static_argnames=("reduction", "tile_e"))
def bond_embedding_forward(edge_attr, stacked_weights, reduction="mean",
                           tile_e=8192):
    """edge_attr: (E, A) int32; stacked_weights: (A, Vp, D) float32."""
    E, A = edge_attr.shape
    A_w, Vp, D = stacked_weights.shape
    assert A == A_w

    # --- Combined per-edge weight Wc (mean scale folded in once) ------------
    if reduction == "cat_last_dim":
        width = A * D
        wc = jnp.zeros((A * Vp, A * D), jnp.float32)
        for a in range(A):
            wc = wc.at[a * Vp:(a + 1) * Vp, a * D:(a + 1) * D].set(
                stacked_weights[a])
    elif reduction in ("mean", "sum"):
        width = D
        wc = stacked_weights.reshape(A * Vp, D).astype(jnp.float32)
        if reduction == "mean":
            wc = wc * (1.0 / A)
    else:
        raise ValueError(f"unknown reduction {reduction!r}")

    # --- Row packing factor so output stores are 128-lane dense -------------
    P = 128 // math.gcd(width, 128)
    if P > 16:          # keep the fused K dimension modest for exotic widths
        P = 1
    out_w = P * width   # multiple of 128 when P > 1, else width itself

    # tile_e: multiple of 8*P (sublane alignment of the packed block), capped
    # at the step-rounded E so small inputs don't pay huge zero-padding.
    step = 8 * P
    tile_e = max(step, min(tile_e, _round_up(E, step)))
    tile_e = _round_up(tile_e, step)

    # --- Ragged E: cdiv grid + wrapper-side zero padding ---------------------
    grid = pl.cdiv(E, tile_e)
    e_pad = grid * tile_e
    if e_pad != E:
        edge_attr = jnp.pad(edge_attr, ((0, e_pad - E), (0, 0)))

    slots = P * A
    idx_packed = edge_attr.reshape(e_pad // P, slots)        # row-major regroup
    w_full = jnp.kron(jnp.eye(P, dtype=jnp.float32), wc) if P > 1 else wc
    tb = tile_e // P

    kernel = functools.partial(_bond_embed_kernel, slots=slots, vp=Vp)

    out_packed = pl.pallas_call(
        kernel,
        out_shape=jax.ShapeDtypeStruct((e_pad // P, out_w), jnp.float32),
        grid_spec=pltpu.PrefetchScalarGridSpec(
            num_scalar_prefetch=0,
            grid=(grid,),
            in_specs=[
                pl.BlockSpec((tb, slots), lambda i: (i, 0)),
                pl.BlockSpec((slots * Vp, out_w), lambda i: (0, 0)),
            ],
            out_specs=pl.BlockSpec((tb, out_w), lambda i: (i, 0)),
        ),
        compiler_params=pltpu.CompilerParams(
            dimension_semantics=("parallel",),
            vmem_limit_bytes=32 * 1024 * 1024,
        ),
    )(idx_packed, w_full)

    # Undo the row packing (pure row-major reinterpretation) and drop padding.
    flat = out_packed.reshape(e_pad, width)[:E]
    if reduction == "cat_last_dim":
        # nn.Embedding on (E, 1) indices keeps the singleton dim in PyTorch,
        # so cat along the last dim yields (E, 1, A*D).
        return flat.reshape(E, 1, width)
    return flat


def init_bond_embedding_params(key, bond_embedding_dim, vocab_dims):
    """Deterministic Xavier-uniform init for each table, stacked & zero-padded."""
    D = bond_embedding_dim
    vp = _round_up(max(vocab_dims), 8)  # pad vocab to sublane multiple
    tables = []
    for i, v in enumerate(vocab_dims):
        k = jax.random.fold_in(key, i)
        bound = (6.0 / (v + D)) ** 0.5  # xavier_uniform on a (v, D) weight
        w = jax.random.uniform(k, (v, D), jnp.float32, minval=-bound, maxval=bound)
        w = jnp.pad(w, ((0, vp - v), (0, 0)))
        tables.append(w)
    return jnp.stack(tables, axis=0)  # (A, Vp, D)


def _reference(edge_attr, stacked_weights, reduction):
    # Pure-JAX reference matching the PyTorch semantics.
    A = edge_attr.shape[1]
    embs = [stacked_weights[a][edge_attr[:, a]] for a in range(A)]  # each (E, D)
    stacked = jnp.stack(embs, axis=1)                               # (E, A, D)
    if reduction == "mean":
        return jnp.mean(stacked, axis=1)
    if reduction == "sum":
        return jnp.sum(stacked, axis=1)
    # cat_last_dim: PyTorch keeps the singleton split dim -> (E, 1, A*D)
    return stacked.reshape(edge_attr.shape[0], 1, -1)


if __name__ == "__main__":
    key = jax.random.PRNGKey(0)
    vocab_dims = get_bond_vocab_dims()
    A = len(vocab_dims)
    D = 32          # bond_embedding_dim
    E = 300         # number of bonds (edges); deliberately not a tile multiple

    w_key, idx_key = jax.random.split(key)
    stacked_weights = init_bond_embedding_params(w_key, D, vocab_dims)

    # edge_attr: (E, A), each column in [0, vocab_dims[a])
    cols = []
    for a, v in enumerate(vocab_dims):
        ka = jax.random.fold_in(idx_key, a)
        cols.append(jax.random.randint(ka, (E, 1), 0, v, dtype=jnp.int32))
    edge_attr = jnp.concatenate(cols, axis=1)

    ok = True
    for reduction in ("mean", "sum", "cat_last_dim"):
        ref = _reference(edge_attr, stacked_weights, reduction)
        for tile_e in (8192, 64):   # big perf tile + small tile (multi-step grid)
            out = bond_embedding_forward(
                edge_attr, stacked_weights, reduction=reduction, tile_e=tile_e
            )
            out = jax.block_until_ready(out)
            if out.shape != ref.shape:
                ok = False
                print(f"SHAPE MISMATCH reduction={reduction} tile_e={tile_e}: "
                      f"{out.shape} vs {ref.shape}")
                continue
            if not jnp.allclose(out, ref, atol=1e-4, rtol=1e-4):
                ok = False
                diff = float(jnp.max(jnp.abs(out - ref)))
                print(f"MISMATCH reduction={reduction} tile_e={tile_e} "
                      f"max_abs_diff={diff}")

    if ok:
        print("KERNEL_OK")
</pallas_src>

<mosaic_0001>
module attributes {stable_mosaic.version = 11 : i64} {
  func.func @_bond_embed_kernel(%arg0: i32, %arg1: memref<80x16xi32, #tpu.memory_space<vmem>>, %arg2: memref<128x128xf32, #tpu.memory_space<vmem>>, %arg3: memref<80x128xf32, #tpu.memory_space<vmem>>) attributes {dimension_semantics = [#tpu.dimension_semantics<parallel>], iteration_bounds = array<i64: 1>, scalar_prefetch = 0 : i64, scratch_operands = 0 : i64, tpu.core_type = #tpu.core_type<tc>, window_params = [{transform_indices = @transform_0, window_bounds = array<i64: 80, 16>}, {pipeline_mode = #tpu.pipeline_mode<synchronous>, transform_indices = @transform_1, window_bounds = array<i64: 128, 128>}, {transform_indices = @transform_2, window_bounds = array<i64: 80, 128>}]} {
    %c0 = arith.constant 0 : index
    %c0_0 = arith.constant 0 : index
    %0 = vector.load %arg1[%c0, %c0_0] : memref<80x16xi32, #tpu.memory_space<vmem>>, vector<80x16xi32>
    %1 = tpu.iota {dimensions = array<i32: 1>} : vector<80x128xi32>
    %cst = arith.constant 0.000000e+00 : f32
    %2 = vector.broadcast %cst : f32 to vector<80x128xf32>
    %3 = vector.extract_strided_slice %0 {offsets = [0, 0], sizes = [80, 1], strides = [1, 1]} : vector<80x16xi32> to vector<80x1xi32>
    %c0_i32 = arith.constant 0 : i32
    %4 = vector.broadcast %c0_i32 : i32 to vector<80x1xi32>
    %5 = arith.addi %3, %4 : vector<80x1xi32>
    %6 = vector.broadcast %5 : vector<80x1xi32> to vector<80x128xi32>
    %7 = arith.cmpi eq, %6, %1 : vector<80x128xi32>
    %cst_1 = arith.constant 1.000000e+00 : f32
    %8 = vector.broadcast %cst_1 : f32 to vector<80x128xf32>
    %9 = arith.select %7, %8, %2 : vector<80x128xi1>, vector<80x128xf32>
    %10 = vector.extract_strided_slice %0 {offsets = [0, 1], sizes = [80, 1], strides = [1, 1]} : vector<80x16xi32> to vector<80x1xi32>
    %c8_i32 = arith.constant 8 : i32
    %11 = vector.broadcast %c8_i32 : i32 to vector<80x1xi32>
    %12 = arith.addi %10, %11 : vector<80x1xi32>
    %13 = vector.broadcast %12 : vector<80x1xi32> to vector<80x128xi32>
    %14 = arith.cmpi eq, %13, %1 : vector<80x128xi32>
    %cst_2 = arith.constant 1.000000e+00 : f32
    %15 = vector.broadcast %cst_2 : f32 to vector<80x128xf32>
    %16 = arith.select %14, %15, %9 : vector<80x128xi1>, vector<80x128xf32>
    %17 = vector.extract_strided_slice %0 {offsets = [0, 2], sizes = [80, 1], strides = [1, 1]} : vector<80x16xi32> to vector<80x1xi32>
    %c16_i32 = arith.constant 16 : i32
    %18 = vector.broadcast %c16_i32 : i32 to vector<80x1xi32>
    %19 = arith.addi %17, %18 : vector<80x1xi32>
    %20 = vector.broadcast %19 : vector<80x1xi32> to vector<80x128xi32>
    %21 = arith.cmpi eq, %20, %1 : vector<80x128xi32>
    %cst_3 = arith.constant 1.000000e+00 : f32
    %22 = vector.broadcast %cst_3 : f32 to vector<80x128xf32>
    %23 = arith.select %21, %22, %16 : vector<80x128xi1>, vector<80x128xf32>
    %24 = vector.extract_strided_slice %0 {offsets = [0, 3], sizes = [80, 1], strides = [1, 1]} : vector<80x16xi32> to vector<80x1xi32>
    %c24_i32 = arith.constant 24 : i32
    %25 = vector.broadcast %c24_i32 : i32 to vector<80x1xi32>
    %26 = arith.addi %24, %25 : vector<80x1xi32>
    %27 = vector.broadcast %26 : vector<80x1xi32> to vector<80x128xi32>
    %28 = arith.cmpi eq, %27, %1 : vector<80x128xi32>
    %cst_4 = arith.constant 1.000000e+00 : f32
    %29 = vector.broadcast %cst_4 : f32 to vector<80x128xf32>
    %30 = arith.select %28, %29, %23 : vector<80x128xi1>, vector<80x128xf32>
    %31 = vector.extract_strided_slice %0 {offsets = [0, 4], sizes = [80, 1], strides = [1, 1]} : vector<80x16xi32> to vector<80x1xi32>
    %c32_i32 = arith.constant 32 : i32
    %32 = vector.broadcast %c32_i32 : i32 to vector<80x1xi32>
    %33 = arith.addi %31, %32 : vector<80x1xi32>
    %34 = vector.broadcast %33 : vector<80x1xi32> to vector<80x128xi32>
    %35 = arith.cmpi eq, %34, %1 : vector<80x128xi32>
    %cst_5 = arith.constant 1.000000e+00 : f32
    %36 = vector.broadcast %cst_5 : f32 to vector<80x128xf32>
    %37 = arith.select %35, %36, %30 : vector<80x128xi1>, vector<80x128xf32>
    %38 = vector.extract_strided_slice %0 {offsets = [0, 5], sizes = [80, 1], strides = [1, 1]} : vector<80x16xi32> to vector<80x1xi32>
    %c40_i32 = arith.constant 40 : i32
    %39 = vector.broadcast %c40_i32 : i32 to vector<80x1xi32>
    %40 = arith.addi %38, %39 : vector<80x1xi32>
    %41 = vector.broadcast %40 : vector<80x1xi32> to vector<80x128xi32>
    %42 = arith.cmpi eq, %41, %1 : vector<80x128xi32>
    %cst_6 = arith.constant 1.000000e+00 : f32
    %43 = vector.broadcast %cst_6 : f32 to vector<80x128xf32>
    %44 = arith.select %42, %43, %37 : vector<80x128xi1>, vector<80x128xf32>
    %45 = vector.extract_strided_slice %0 {offsets = [0, 6], sizes = [80, 1], strides = [1, 1]} : vector<80x16xi32> to vector<80x1xi32>
    %c48_i32 = arith.constant 48 : i32
    %46 = vector.broadcast %c48_i32 : i32 to vector<80x1xi32>
    %47 = arith.addi %45, %46 : vector<80x1xi32>
    %48 = vector.broadcast %47 : vector<80x1xi32> to vector<80x128xi32>
    %49 = arith.cmpi eq, %48, %1 : vector<80x128xi32>
    %cst_7 = arith.constant 1.000000e+00 : f32
    %50 = vector.broadcast %cst_7 : f32 to vector<80x128xf32>
    %51 = arith.select %49, %50, %44 : vector<80x128xi1>, vector<80x128xf32>
    %52 = vector.extract_strided_slice %0 {offsets = [0, 7], sizes = [80, 1], strides = [1, 1]} : vector<80x16xi32> to vector<80x1xi32>
    %c56_i32 = arith.constant 56 : i32
    %53 = vector.broadcast %c56_i32 : i32 to vector<80x1xi32>
    %54 = arith.addi %52, %53 : vector<80x1xi32>
    %55 = vector.broadcast %54 : vector<80x1xi32> to vector<80x128xi32>
    %56 = arith.cmpi eq, %55, %1 : vector<80x128xi32>
    %cst_8 = arith.constant 1.000000e+00 : f32
    %57 = vector.broadcast %cst_8 : f32 to vector<80x128xf32>
    %58 = arith.select %56, %57, %51 : vector<80x128xi1>, vector<80x128xf32>
    %59 = vector.extract_strided_slice %0 {offsets = [0, 8], sizes = [80, 1], strides = [1, 1]} : vector<80x16xi32> to vector<80x1xi32>
    %c64_i32 = arith.constant 64 : i32
    %60 = vector.broadcast %c64_i32 : i32 to vector<80x1xi32>
    %61 = arith.addi %59, %60 : vector<80x1xi32>
    %62 = vector.broadcast %61 : vector<80x1xi32> to vector<80x128xi32>
    %63 = arith.cmpi eq, %62, %1 : vector<80x128xi32>
    %cst_9 = arith.constant 1.000000e+00 : f32
    %64 = vector.broadcast %cst_9 : f32 to vector<80x128xf32>
    %65 = arith.select %63, %64, %58 : vector<80x128xi1>, vector<80x128xf32>
    %66 = vector.extract_strided_slice %0 {offsets = [0, 9], sizes = [80, 1], strides = [1, 1]} : vector<80x16xi32> to vector<80x1xi32>
    %c72_i32 = arith.constant 72 : i32
    %67 = vector.broadcast %c72_i32 : i32 to vector<80x1xi32>
    %68 = arith.addi %66, %67 : vector<80x1xi32>
    %69 = vector.broadcast %68 : vector<80x1xi32> to vector<80x128xi32>
    %70 = arith.cmpi eq, %69, %1 : vector<80x128xi32>
    %cst_10 = arith.constant 1.000000e+00 : f32
    %71 = vector.broadcast %cst_10 : f32 to vector<80x128xf32>
    %72 = arith.select %70, %71, %65 : vector<80x128xi1>, vector<80x128xf32>
    %73 = vector.extract_strided_slice %0 {offsets = [0, 10], sizes = [80, 1], strides = [1, 1]} : vector<80x16xi32> to vector<80x1xi32>
    %c80_i32 = arith.constant 80 : i32
    %74 = vector.broadcast %c80_i32 : i32 to vector<80x1xi32>
    %75 = arith.addi %73, %74 : vector<80x1xi32>
    %76 = vector.broadcast %75 : vector<80x1xi32> to vector<80x128xi32>
    %77 = arith.cmpi eq, %76, %1 : vector<80x128xi32>
    %cst_11 = arith.constant 1.000000e+00 : f32
    %78 = vector.broadcast %cst_11 : f32 to vector<80x128xf32>
    %79 = arith.select %77, %78, %72 : vector<80x128xi1>, vector<80x128xf32>
    %80 = vector.extract_strided_slice %0 {offsets = [0, 11], sizes = [80, 1], strides = [1, 1]} : vector<80x16xi32> to vector<80x1xi32>
    %c88_i32 = arith.constant 88 : i32
    %81 = vector.broadcast %c88_i32 : i32 to vector<80x1xi32>
    %82 = arith.addi %80, %81 : vector<80x1xi32>
    %83 = vector.broadcast %82 : vector<80x1xi32> to vector<80x128xi32>
    %84 = arith.cmpi eq, %83, %1 : vector<80x128xi32>
    %cst_12 = arith.constant 1.000000e+00 : f32
    %85 = vector.broadcast %cst_12 : f32 to vector<80x128xf32>
    %86 = arith.select %84, %85, %79 : vector<80x128xi1>, vector<80x128xf32>
    %87 = vector.extract_strided_slice %0 {offsets = [0, 12], sizes = [80, 1], strides = [1, 1]} : vector<80x16xi32> to vector<80x1xi32>
    %c96_i32 = arith.constant 96 : i32
    %88 = vector.broadcast %c96_i32 : i32 to vector<80x1xi32>
    %89 = arith.addi %87, %88 : vector<80x1xi32>
    %90 = vector.broadcast %89 : vector<80x1xi32> to vector<80x128xi32>
    %91 = arith.cmpi eq, %90, %1 : vector<80x128xi32>
    %cst_13 = arith.constant 1.000000e+00 : f32
    %92 = vector.broadcast %cst_13 : f32 to vector<80x128xf32>
    %93 = arith.select %91, %92, %86 : vector<80x128xi1>, vector<80x128xf32>
    %94 = vector.extract_strided_slice %0 {offsets = [0, 13], sizes = [80, 1], strides = [1, 1]} : vector<80x16xi32> to vector<80x1xi32>
    %c104_i32 = arith.constant 104 : i32
    %95 = vector.broadcast %c104_i32 : i32 to vector<80x1xi32>
    %96 = arith.addi %94, %95 : vector<80x1xi32>
    %97 = vector.broadcast %96 : vector<80x1xi32> to vector<80x128xi32>
    %98 = arith.cmpi eq, %97, %1 : vector<80x128xi32>
    %cst_14 = arith.constant 1.000000e+00 : f32
    %99 = vector.broadcast %cst_14 : f32 to vector<80x128xf32>
    %100 = arith.select %98, %99, %93 : vector<80x128xi1>, vector<80x128xf32>
    %101 = vector.extract_strided_slice %0 {offsets = [0, 14], sizes = [80, 1], strides = [1, 1]} : vector<80x16xi32> to vector<80x1xi32>
    %c112_i32 = arith.constant 112 : i32
    %102 = vector.broadcast %c112_i32 : i32 to vector<80x1xi32>
    %103 = arith.addi %101, %102 : vector<80x1xi32>
    %104 = vector.broadcast %103 : vector<80x1xi32> to vector<80x128xi32>
    %105 = arith.cmpi eq, %104, %1 : vector<80x128xi32>
    %cst_15 = arith.constant 1.000000e+00 : f32
    %106 = vector.broadcast %cst_15 : f32 to vector<80x128xf32>
    %107 = arith.select %105, %106, %100 : vector<80x128xi1>, vector<80x128xf32>
    %108 = vector.extract_strided_slice %0 {offsets = [0, 15], sizes = [80, 1], strides = [1, 1]} : vector<80x16xi32> to vector<80x1xi32>
    %c120_i32 = arith.constant 120 : i32
    %109 = vector.broadcast %c120_i32 : i32 to vector<80x1xi32>
    %110 = arith.addi %108, %109 : vector<80x1xi32>
    %111 = vector.broadcast %110 : vector<80x1xi32> to vector<80x128xi32>
    %112 = arith.cmpi eq, %111, %1 : vector<80x128xi32>
    %cst_16 = arith.constant 1.000000e+00 : f32
    %113 = vector.broadcast %cst_16 : f32 to vector<80x128xf32>
    %114 = arith.select %112, %113, %107 : vector<80x128xi1>, vector<80x128xf32>
    %c0_17 = arith.constant 0 : index
    %c0_18 = arith.constant 0 : index
    %115 = vector.load %arg2[%c0_17, %c0_18] : memref<128x128xf32, #tpu.memory_space<vmem>>, vector<128x128xf32>
    %cst_19 = arith.constant dense<0.000000e+00> : vector<80x128xf32>
    %116 = tpu.matmul %114, %115, %cst_19 {dimension_numbers = #tpu.dot_dimension_numbers<[1], [0], [0], [1], [0, 0, 1, 1], [], []>} : vector<80x128xf32>, vector<128x128xf32>, vector<80x128xf32> -> vector<80x128xf32>
    %c0_20 = arith.constant 0 : index
    %c0_21 = arith.constant 0 : index
    %117 = vector.load %arg3[%c0_20, %c0_21] : memref<80x128xf32, #tpu.memory_space<vmem>>, vector<80x128xf32>
    tpu.vector_store %arg3[%c0_20, %c0_21], %116 {strides = array<i32>} : memref<80x128xf32, #tpu.memory_space<vmem>>, vector<80x128xf32>,
    return
  }
  func.func @transform_0(%arg0: i32) -> (i32, i32) {
    %c0_i32 = arith.constant 0 : i32
    %c0_i32_0 = arith.constant 0 : i32
    return %arg0, %c0_i32 : i32, i32
  }
  func.func @transform_1(%arg0: i32) -> (i32, i32) {
    %c0_i32 = arith.constant 0 : i32
    %c0_i32_0 = arith.constant 0 : i32
    %c0_i32_1 = arith.constant 0 : i32
    return %c0_i32, %c0_i32_0 : i32, i32
  }
  func.func @transform_2(%arg0: i32) -> (i32, i32) {
    %c0_i32 = arith.constant 0 : i32
    %c0_i32_0 = arith.constant 0 : i32
    return %arg0, %c0_i32 : i32, i32
  }
}

</mosaic_0001>

<llo_original>
// kernel: bond_embedding_forward.1
$region0: #{bond_embedding_forward.1}
  #allocation0 [shape = 'u32[]', space=smem, size = 0x4, offset = 0x4, fixed_abs, tag = 'smem constant byte address 0x4 - core index']
  #allocation1 [shape = 'u32[144,128]{1,0:T(1,128)}', space=vmem, size = 0x12000, scoped, tag = 'internal scratch']
  %s0 = inlined_call_operand.vmem [shape: s32[80,16], index: 0, kind: input, shape index: {}]
  %s1 = inlined_call_operand.vmem [shape: f32[128,128], index: 1, kind: input, shape index: {}]
  %s2 = inlined_call_operand.vmem [shape: f32[80,128], index: 2, kind: output, shape index: {}]
  %s3 = sld [smem:[#allocation0]]
  $region18: #{bond_embedding_forward.1} parent=0
    _
  %s5 = ssub.s32 1, %s3
  %s6 = scalar_select 0, %s5, %s3
  // Predicated region
  $region2: #{bond_embedding_forward.1} parent=0 // pred_check
    _
  $region3: #{bond_embedding_forward.1} parent=0 // pred_check_branch
    %8 = sbr.rel (0) target = $region5
  $region4: #{bond_embedding_forward.1} parent=0 // pred_region
    _
  $region5: #{bond_embedding_forward.1} parent=0 // pred_fallthru
    _
  // Predicated region
  $region6: #{bond_embedding_forward.1} parent=0 // pred_check
    _
  $region7: #{bond_embedding_forward.1} parent=0 // pred_check_branch
    %10 = sbr.rel (0) target = $region9
  $region8: #{bond_embedding_forward.1} parent=0 // pred_region
    _
  $region9: #{bond_embedding_forward.1} parent=0 // pred_fallthru
    _
  %v11 = vld [vmem:[%s0] sm:$0xff]
  %v12 = vld [vmem:[%s0 + $0x8] sm:$0xff]
  %v13 = vld [vmem:[%s0 + $0x10] sm:$0xff]
  %v14 = vld [vmem:[%s0 + $0x18] sm:$0xff]
  %v15 = vld [vmem:[%s0 + $0x20] sm:$0xff]
  %v16 = vld [vmem:[%s0 + $0x28] sm:$0xff]
  %v17 = vld [vmem:[%s0 + $0x30] sm:$0xff]
  %v18 = vld [vmem:[%s0 + $0x38] sm:$0xff]
  %v19 = vld [vmem:[%s0 + $0x40] sm:$0xff]
  %v20 = vld [vmem:[%s0 + $0x48] sm:$0xff]
  %v21 = vlaneseq
  %v22 = vand.u32 %v21, 127
  %23 = vset.pattern.permute.xlu0 0
  %24 = vperm.xlu0 %23, %v11
  %v25 = vpop.permute.xlu0 %24
  %26 = vset.pattern.permute.xlu0 0
  %27 = vperm.xlu0 %26, %v12
  %v28 = vpop.permute.xlu0 %27
  %29 = vset.pattern.permute.xlu0 0
  %30 = vperm.xlu0 %29, %v13
  %v31 = vpop.permute.xlu0 %30
  %32 = vset.pattern.permute.xlu0 0
  %33 = vperm.xlu0 %32, %v14
  %v34 = vpop.permute.xlu0 %33
  %35 = vset.pattern.permute.xlu0 0
  %36 = vperm.xlu0 %35, %v15
  %v37 = vpop.permute.xlu0 %36
  %38 = vset.pattern.permute.xlu0 0
  %39 = vperm.xlu0 %38, %v16
  %v40 = vpop.permute.xlu0 %39
  %41 = vset.pattern.permute.xlu0 0
  %42 = vperm.xlu0 %41, %v17
  %v43 = vpop.permute.xlu0 %42
  %44 = vset.pattern.permute.xlu0 0
  %45 = vperm.xlu0 %44, %v18
  %v46 = vpop.permute.xlu0 %45
  %47 = vset.pattern.permute.xlu0 0
  %48 = vperm.xlu0 %47, %v19
  %v49 = vpop.permute.xlu0 %48
  %50 = vset.pattern.permute.xlu0 0
  %51 = vperm.xlu0 %50, %v20
  %v52 = vpop.permute.xlu0 %51
  %vm53 = vcmp.eq.s32.totalorder %v25, %v22
  %vm54 = vcmp.eq.s32.totalorder %v28, %v22
  %vm55 = vcmp.eq.s32.totalorder %v31, %v22
  %vm56 = vcmp.eq.s32.totalorder %v34, %v22
  %vm57 = vcmp.eq.s32.totalorder %v37, %v22
  %vm58 = vcmp.eq.s32.totalorder %v40, %v22
  %vm59 = vcmp.eq.s32.totalorder %v43, %v22
  %vm60 = vcmp.eq.s32.totalorder %v46, %v22
  %vm61 = vcmp.eq.s32.totalorder %v49, %v22
  %vm62 = vcmp.eq.s32.totalorder %v52, %v22
  %v63 = vsel %vm53, 1.0, 0.0
  %v64 = vsel %vm54, 1.0, 0.0
  %v65 = vsel %vm55, 1.0, 0.0
  %v66 = vsel %vm56, 1.0, 0.0
  %v67 = vsel %vm57, 1.0, 0.0
  %v68 = vsel %vm58, 1.0, 0.0
  %v69 = vsel %vm59, 1.0, 0.0
  %v70 = vsel %vm60, 1.0, 0.0
  %v71 = vsel %vm61, 1.0, 0.0
  %v72 = vsel %vm62, 1.0, 0.0
  %v73 = vadd.s32 %v11, 8
  %v74 = vadd.s32 %v12, 8
  %v75 = vadd.s32 %v13, 8
  %v76 = vadd.s32 %v14, 8
  %v77 = vadd.s32 %v15, 8
  %v78 = vadd.s32 %v16, 8
  %v79 = vadd.s32 %v17, 8
  %v80 = vadd.s32 %v18, 8
  %v81 = vadd.s32 %v19, 8
  %v82 = vadd.s32 %v20, 8
  %83 = vset.pattern.permute.xlu0 1
  %84 = vperm.xlu0 %83, %v73
  %v85 = vpop.permute.xlu0 %84
  %86 = vset.pattern.permute.xlu0 1
  %87 = vperm.xlu0 %86, %v74
  %v88 = vpop.permute.xlu0 %87
  %89 = vset.pattern.permute.xlu0 1
  %90 = vperm.xlu0 %89, %v75
  %v91 = vpop.permute.xlu0 %90
  %92 = vset.pattern.permute.xlu0 1
  %93 = vperm.xlu0 %92, %v76
  %v94 = vpop.permute.xlu0 %93
  %95 = vset.pattern.permute.xlu0 1
  %96 = vperm.xlu0 %95, %v77
  %v97 = vpop.permute.xlu0 %96
  %98 = vset.pattern.permute.xlu0 1
  %99 = vperm.xlu0 %98, %v78
  %v100 = vpop.permute.xlu0 %99
  %101 = vset.pattern.permute.xlu0 1
  %102 = vperm.xlu0 %101, %v79
  %v103 = vpop.permute.xlu0 %102
  %104 = vset.pattern.permute.xlu0 1
  %105 = vperm.xlu0 %104, %v80
  %v106 = vpop.permute.xlu0 %105
  %107 = vset.pattern.permute.xlu0 1
  %108 = vperm.xlu0 %107, %v81
  %v109 = vpop.permute.xlu0 %108
  %110 = vset.pattern.permute.xlu0 1
  %111 = vperm.xlu0 %110, %v82
  %v112 = vpop.permute.xlu0 %111
  %vm113 = vcmp.eq.s32.totalorder %v85, %v22
  %vm114 = vcmp.eq.s32.totalorder %v88, %v22
  %vm115 = vcmp.eq.s32.totalorder %v91, %v22
  %vm116 = vcmp.eq.s32.totalorder %v94, %v22
  %vm117 = vcmp.eq.s32.totalorder %v97, %v22
  %vm118 = vcmp.eq.s32.totalorder %v100, %v22
  %vm119 = vcmp.eq.s32.totalorder %v103, %v22
  %vm120 = vcmp.eq.s32.totalorder %v106, %v22
  %vm121 = vcmp.eq.s32.totalorder %v109, %v22
  %vm122 = vcmp.eq.s32.totalorder %v112, %v22
  %v123 = vsel %vm113, 1.0, %v63
  %v124 = vsel %vm114, 1.0, %v64
  %v125 = vsel %vm115, 1.0, %v65
  %v126 = vsel %vm116, 1.0, %v66
  %v127 = vsel %vm117, 1.0, %v67
  %v128 = vsel %vm118, 1.0, %v68
  %v129 = vsel %vm119, 1.0, %v69
  %v130 = vsel %vm120, 1.0, %v70
  %v131 = vsel %vm121, 1.0, %v71
  %v132 = vsel %vm122, 1.0, %v72
  %v133 = vadd.s32 %v11, 16
  %v134 = vadd.s32 %v12, 16
  %v135 = vadd.s32 %v13, 16
  %v136 = vadd.s32 %v14, 16
  %v137 = vadd.s32 %v15, 16
  %v138 = vadd.s32 %v16, 16
  %v139 = vadd.s32 %v17, 16
  %v140 = vadd.s32 %v18, 16
  %v141 = vadd.s32 %v19, 16
  %v142 = vadd.s32 %v20, 16
  %143 = vset.pattern.permute.xlu0 2
  %144 = vperm.xlu0 %143, %v133
  %v145 = vpop.permute.xlu0 %144
  %146 = vset.pattern.permute.xlu0 2
  %147 = vperm.xlu0 %146, %v134
  %v148 = vpop.permute.xlu0 %147
  %149 = vset.pattern.permute.xlu0 2
  %150 = vperm.xlu0 %149, %v135
  %v151 = vpop.permute.xlu0 %150
  %152 = vset.pattern.permute.xlu0 2
  %153 = vperm.xlu0 %152, %v136
  %v154 = vpop.permute.xlu0 %153
  %155 = vset.pattern.permute.xlu0 2
  %156 = vperm.xlu0 %155, %v137
  %v157 = vpop.permute.xlu0 %156
  %158 = vset.pattern.permute.xlu0 2
  %159 = vperm.xlu0 %158, %v138
  %v160 = vpop.permute.xlu0 %159
  %161 = vset.pattern.permute.xlu0 2
  %162 = vperm.xlu0 %161, %v139
  %v163 = vpop.permute.xlu0 %162
  %164 = vset.pattern.permute.xlu0 2
  %165 = vperm.xlu0 %164, %v140
  %v166 = vpop.permute.xlu0 %165
  %167 = vset.pattern.permute.xlu0 2
  %168 = vperm.xlu0 %167, %v141
  %v169 = vpop.permute.xlu0 %168
  %170 = vset.pattern.permute.xlu0 2
  %171 = vperm.xlu0 %170, %v142
  %v172 = vpop.permute.xlu0 %171
  %vm173 = vcmp.eq.s32.totalorder %v145, %v22
  %vm174 = vcmp.eq.s32.totalorder %v148, %v22
  %vm175 = vcmp.eq.s32.totalorder %v151, %v22
  %vm176 = vcmp.eq.s32.totalorder %v154, %v22
  %vm177 = vcmp.eq.s32.totalorder %v157, %v22
  %vm178 = vcmp.eq.s32.totalorder %v160, %v22
  %vm179 = vcmp.eq.s32.totalorder %v163, %v22
  %vm180 = vcmp.eq.s32.totalorder %v166, %v22
  %vm181 = vcmp.eq.s32.totalorder %v169, %v22
  %vm182 = vcmp.eq.s32.totalorder %v172, %v22
  %v183 = vsel %vm173, 1.0, %v123
  %v184 = vsel %vm174, 1.0, %v124
  %v185 = vsel %vm175, 1.0, %v125
  %v186 = vsel %vm176, 1.0, %v126
  %v187 = vsel %vm177, 1.0, %v127
  %v188 = vsel %vm178, 1.0, %v128
  %v189 = vsel %vm179, 1.0, %v129
  %v190 = vsel %vm180, 1.0, %v130
  %v191 = vsel %vm181, 1.0, %v131
  %v192 = vsel %vm182, 1.0, %v132
  %v193 = vadd.s32 %v11, 24
  %v194 = vadd.s32 %v12, 24
  %v195 = vadd.s32 %v13, 24
  %v196 = vadd.s32 %v14, 24
  %v197 = vadd.s32 %v15, 24
  %v198 = vadd.s32 %v16, 24
  %v199 = vadd.s32 %v17, 24
  %v200 = vadd.s32 %v18, 24
  %v201 = vadd.s32 %v19, 24
  %v202 = vadd.s32 %v20, 24
  %203 = vset.pattern.permute.xlu0 3
  %204 = vperm.xlu0 %203, %v193
  %v205 = vpop.permute.xlu0 %204
  %206 = vset.pattern.permute.xlu0 3
  %207 = vperm.xlu0 %206, %v194
  %v208 = vpop.permute.xlu0 %207
  %209 = vset.pattern.permute.xlu0 3
  %210 = vperm.xlu0 %209, %v195
  %v211 = vpop.permute.xlu0 %210
  %212 = vset.pattern.permute.xlu0 3
  %213 = vperm.xlu0 %212, %v196
  %v214 = vpop.permute.xlu0 %213
  %215 = vset.pattern.permute.xlu0 3
  %216 = vperm.xlu0 %215, %v197
  %v217 = vpop.permute.xlu0 %216
  %218 = vset.pattern.permute.xlu0 3
  %219 = vperm.xlu0 %218, %v198
  %v220 = vpop.permute.xlu0 %219
  %221 = vset.pattern.permute.xlu0 3
  %222 = vperm.xlu0 %221, %v199
  %v223 = vpop.permute.xlu0 %222
  %224 = vset.pattern.permute.xlu0 3
  %225 = vperm.xlu0 %224, %v200
  %v226 = vpop.permute.xlu0 %225
  %227 = vset.pattern.permute.xlu0 3
  %228 = vperm.xlu0 %227, %v201
  %v229 = vpop.permute.xlu0 %228
  %230 = vset.pattern.permute.xlu0 3
  %231 = vperm.xlu0 %230, %v202
  %v232 = vpop.permute.xlu0 %231
  %vm233 = vcmp.eq.s32.totalorder %v205, %v22
  %vm234 = vcmp.eq.s32.totalorder %v208, %v22
  %vm235 = vcmp.eq.s32.totalorder %v211, %v22
  %vm236 = vcmp.eq.s32.totalorder %v214, %v22
  %vm237 = vcmp.eq.s32.totalorder %v217, %v22
  %vm238 = vcmp.eq.s32.totalorder %v220, %v22
  %vm239 = vcmp.eq.s32.totalorder %v223, %v22
  %vm240 = vcmp.eq.s32.totalorder %v226, %v22
  %vm241 = vcmp.eq.s32.totalorder %v229, %v22
  %vm242 = vcmp.eq.s32.totalorder %v232, %v22
  %v243 = vsel %vm233, 1.0, %v183
  %v244 = vsel %vm234, 1.0, %v184
  %v245 = vsel %vm235, 1.0, %v185
  %v246 = vsel %vm236, 1.0, %v186
  %v247 = vsel %vm237, 1.0, %v187
  %v248 = vsel %vm238, 1.0, %v188
  %v249 = vsel %vm239, 1.0, %v189
  %v250 = vsel %vm240, 1.0, %v190
  %v251 = vsel %vm241, 1.0, %v191
  %v252 = vsel %vm242, 1.0, %v192
  %v253 = vadd.s32 %v11, 32
  %v254 = vadd.s32 %v12, 32
  %v255 = vadd.s32 %v13, 32
  %v256 = vadd.s32 %v14, 32
  %v257 = vadd.s32 %v15, 32
  %v258 = vadd.s32 %v16, 32
  %v259 = vadd.s32 %v17, 32
  %v260 = vadd.s32 %v18, 32
  %v261 = vadd.s32 %v19, 32
  %v262 = vadd.s32 %v20, 32
  %263 = vset.pattern.permute.xlu0 4
  %264 = vperm.xlu0 %263, %v253
  %v265 = vpop.permute.xlu0 %264
  %266 = vset.pattern.permute.xlu0 4
  %267 = vperm.xlu0 %266, %v254
  %v268 = vpop.permute.xlu0 %267
  %269 = vset.pattern.permute.xlu0 4
  %270 = vperm.xlu0 %269, %v255
  %v271 = vpop.permute.xlu0 %270
  %272 = vset.pattern.permute.xlu0 4
  %273 = vperm.xlu0 %272, %v256
  %v274 = vpop.permute.xlu0 %273
  %275 = vset.pattern.permute.xlu0 4
  %276 = vperm.xlu0 %275, %v257
  %v277 = vpop.permute.xlu0 %276
  %278 = vset.pattern.permute.xlu0 4
  %279 = vperm.xlu0 %278, %v258
  %v280 = vpop.permute.xlu0 %279
  %281 = vset.pattern.permute.xlu0 4
  %282 = vperm.xlu0 %281, %v259
  %v283 = vpop.permute.xlu0 %282
  %284 = vset.pattern.permute.xlu0 4
  %285 = vperm.xlu0 %284, %v260
  %v286 = vpop.permute.xlu0 %285
  %287 = vset.pattern.permute.xlu0 4
  %288 = vperm.xlu0 %287, %v261
  %v289 = vpop.permute.xlu0 %288
  %290 = vset.pattern.permute.xlu0 4
  %291 = vperm.xlu0 %290, %v262
  %v292 = vpop.permute.xlu0 %291
  %vm293 = vcmp.eq.s32.totalorder %v265, %v22
  %vm294 = vcmp.eq.s32.totalorder %v268, %v22
  %vm295 = vcmp.eq.s32.totalorder %v271, %v22
  %vm296 = vcmp.eq.s32.totalorder %v274, %v22
  %vm297 = vcmp.eq.s32.totalorder %v277, %v22
  %vm298 = vcmp.eq.s32.totalorder %v280, %v22
  %vm299 = vcmp.eq.s32.totalorder %v283, %v22
  %vm300 = vcmp.eq.s32.totalorder %v286, %v22
  %vm301 = vcmp.eq.s32.totalorder %v289, %v22
  %vm302 = vcmp.eq.s32.totalorder %v292, %v22
  %v303 = vsel %vm293, 1.0, %v243
  %v304 = vsel %vm294, 1.0, %v244
  %v305 = vsel %vm295, 1.0, %v245
  %v306 = vsel %vm296, 1.0, %v246
  %v307 = vsel %vm297, 1.0, %v247
  %v308 = vsel %vm298, 1.0, %v248
  %v309 = vsel %vm299, 1.0, %v249
  %v310 = vsel %vm300, 1.0, %v250
  %v311 = vsel %vm301, 1.0, %v251
  %v312 = vsel %vm302, 1.0, %v252
  %v313 = vadd.s32 %v11, 40
  %v314 = vadd.s32 %v12, 40
  %v315 = vadd.s32 %v13, 40
  %v316 = vadd.s32 %v14, 40
  %v317 = vadd.s32 %v15, 40
  %v318 = vadd.s32 %v16, 40
  %v319 = vadd.s32 %v17, 40
  %v320 = vadd.s32 %v18, 40
  %v321 = vadd.s32 %v19, 40
  %v322 = vadd.s32 %v20, 40
  %323 = vset.pattern.permute.xlu0 5
  %324 = vperm.xlu0 %323, %v313
  %v325 = vpop.permute.xlu0 %324
  %326 = vset.pattern.permute.xlu0 5
  %327 = vperm.xlu0 %326, %v314
  %v328 = vpop.permute.xlu0 %327
  %329 = vset.pattern.permute.xlu0 5
  %330 = vperm.xlu0 %329, %v315
  %v331 = vpop.permute.xlu0 %330
  %332 = vset.pattern.permute.xlu0 5
  %333 = vperm.xlu0 %332, %v316
  %v334 = vpop.permute.xlu0 %333
  %335 = vset.pattern.permute.xlu0 5
  %336 = vperm.xlu0 %335, %v317
  %v337 = vpop.permute.xlu0 %336
  %338 = vset.pattern.permute.xlu0 5
  %339 = vperm.xlu0 %338, %v318
  %v340 = vpop.permute.xlu0 %339
  %341 = vset.pattern.permute.xlu0 5
  %342 = vperm.xlu0 %341, %v319
  %v343 = vpop.permute.xlu0 %342
  %344 = vset.pattern.permute.xlu0 5
  %345 = vperm.xlu0 %344, %v320
  %v346 = vpop.permute.xlu0 %345
  %347 = vset.pattern.permute.xlu0 5
  %348 = vperm.xlu0 %347, %v321
  %v349 = vpop.permute.xlu0 %348
  %350 = vset.pattern.permute.xlu0 5
  %351 = vperm.xlu0 %350, %v322
  %v352 = vpop.permute.xlu0 %351
  %vm353 = vcmp.eq.s32.totalorder %v325, %v22
  %vm354 = vcmp.eq.s32.totalorder %v328, %v22
  %vm355 = vcmp.eq.s32.totalorder %v331, %v22
  %vm356 = vcmp.eq.s32.totalorder %v334, %v22
  %vm357 = vcmp.eq.s32.totalorder %v337, %v22
  %vm358 = vcmp.eq.s32.totalorder %v340, %v22
  %vm359 = vcmp.eq.s32.totalorder %v343, %v22
  %vm360 = vcmp.eq.s32.totalorder %v346, %v22
  %vm361 = vcmp.eq.s32.totalorder %v349, %v22
  %vm362 = vcmp.eq.s32.totalorder %v352, %v22
  %v363 = vsel %vm353, 1.0, %v303
  %v364 = vsel %vm354, 1.0, %v304
  %v365 = vsel %vm355, 1.0, %v305
  %v366 = vsel %vm356, 1.0, %v306
  %v367 = vsel %vm357, 1.0, %v307
  %v368 = vsel %vm358, 1.0, %v308
  %v369 = vsel %vm359, 1.0, %v309
  %v370 = vsel %vm360, 1.0, %v310
  %v371 = vsel %vm361, 1.0, %v311
  %v372 = vsel %vm362, 1.0, %v312
  %v373 = vadd.s32 %v11, 48
  %v374 = vadd.s32 %v12, 48
  %v375 = vadd.s32 %v13, 48
  %v376 = vadd.s32 %v14, 48
  %v377 = vadd.s32 %v15, 48
  %v378 = vadd.s32 %v16, 48
  %v379 = vadd.s32 %v17, 48
  %v380 = vadd.s32 %v18, 48
  %v381 = vadd.s32 %v19, 48
  %v382 = vadd.s32 %v20, 48
  %383 = vset.pattern.permute.xlu0 6
  %384 = vperm.xlu0 %383, %v373
  %v385 = vpop.permute.xlu0 %384
  %386 = vset.pattern.permute.xlu0 6
  %387 = vperm.xlu0 %386, %v374
  %v388 = vpop.permute.xlu0 %387
  %389 = vset.pattern.permute.xlu0 6
  %390 = vperm.xlu0 %389, %v375
  %v391 = vpop.permute.xlu0 %390
  %392 = vset.pattern.permute.xlu0 6
  %393 = vperm.xlu0 %392, %v376
  %v394 = vpop.permute.xlu0 %393
  %395 = vset.pattern.permute.xlu0 6
  %396 = vperm.xlu0 %395, %v377
  %v397 = vpop.permute.xlu0 %396
  %398 = vset.pattern.permute.xlu0 6
  %399 = vperm.xlu0 %398, %v378
  %v400 = vpop.permute.xlu0 %399
  %401 = vset.pattern.permute.xlu0 6
  %402 = vperm.xlu0 %401, %v379
  %v403 = vpop.permute.xlu0 %402
  %404 = vset.pattern.permute.xlu0 6
  %405 = vperm.xlu0 %404, %v380
  %v406 = vpop.permute.xlu0 %405
  %407 = vset.pattern.permute.xlu0 6
  %408 = vperm.xlu0 %407, %v381
  %v409 = vpop.permute.xlu0 %408
  %410 = vset.pattern.permute.xlu0 6
  %411 = vperm.xlu0 %410, %v382
  %v412 = vpop.permute.xlu0 %411
  %vm413 = vcmp.eq.s32.totalorder %v385, %v22
  %vm414 = vcmp.eq.s32.totalorder %v388, %v22
  %vm415 = vcmp.eq.s32.totalorder %v391, %v22
  %vm416 = vcmp.eq.s32.totalorder %v394, %v22
  %vm417 = vcmp.eq.s32.totalorder %v397, %v22
  %vm418 = vcmp.eq.s32.totalorder %v400, %v22
  %vm419 = vcmp.eq.s32.totalorder %v403, %v22
  %vm420 = vcmp.eq.s32.totalorder %v406, %v22
  %vm421 = vcmp.eq.s32.totalorder %v409, %v22
  %vm422 = vcmp.eq.s32.totalorder %v412, %v22
  %v423 = vsel %vm413, 1.0, %v363
  %v424 = vsel %vm414, 1.0, %v364
  %v425 = vsel %vm415, 1.0, %v365
  %v426 = vsel %vm416, 1.0, %v366
  %v427 = vsel %vm417, 1.0, %v367
  %v428 = vsel %vm418, 1.0, %v368
  %v429 = vsel %vm419, 1.0, %v369
  %v430 = vsel %vm420, 1.0, %v370
  %v431 = vsel %vm421, 1.0, %v371
  %v432 = vsel %vm422, 1.0, %v372
  %v433 = vadd.s32 %v11, 56
  %v434 = vadd.s32 %v12, 56
  %v435 = vadd.s32 %v13, 56
  %v436 = vadd.s32 %v14, 56
  %v437 = vadd.s32 %v15, 56
  %v438 = vadd.s32 %v16, 56
  %v439 = vadd.s32 %v17, 56
  %v440 = vadd.s32 %v18, 56
  %v441 = vadd.s32 %v19, 56
  %v442 = vadd.s32 %v20, 56
  %443 = vset.pattern.permute.xlu0 7
  %444 = vperm.xlu0 %443, %v433
  %v445 = vpop.permute.xlu0 %444
  %446 = vset.pattern.permute.xlu0 7
  %447 = vperm.xlu0 %446, %v434
  %v448 = vpop.permute.xlu0 %447
  %449 = vset.pattern.permute.xlu0 7
  %450 = vperm.xlu0 %449, %v435
  %v451 = vpop.permute.xlu0 %450
  %452 = vset.pattern.permute.xlu0 7
  %453 = vperm.xlu0 %452, %v436
  %v454 = vpop.permute.xlu0 %453
  %455 = vset.pattern.permute.xlu0 7
  %456 = vperm.xlu0 %455, %v437
  %v457 = vpop.permute.xlu0 %456
  %458 = vset.pattern.permute.xlu0 7
  %459 = vperm.xlu0 %458, %v438
  %v460 = vpop.permute.xlu0 %459
  %461 = vset.pattern.permute.xlu0 7
  %462 = vperm.xlu0 %461, %v439
  %v463 = vpop.permute.xlu0 %462
  %464 = vset.pattern.permute.xlu0 7
  %465 = vperm.xlu0 %464, %v440
  %v466 = vpop.permute.xlu0 %465
  %467 = vset.pattern.permute.xlu0 7
  %468 = vperm.xlu0 %467, %v441
  %v469 = vpop.permute.xlu0 %468
  %470 = vset.pattern.permute.xlu0 7
  %471 = vperm.xlu0 %470, %v442
  %v472 = vpop.permute.xlu0 %471
  %vm473 = vcmp.eq.s32.totalorder %v445, %v22
  %vm474 = vcmp.eq.s32.totalorder %v448, %v22
  %vm475 = vcmp.eq.s32.totalorder %v451, %v22
  %vm476 = vcmp.eq.s32.totalorder %v454, %v22
  %vm477 = vcmp.eq.s32.totalorder %v457, %v22
  %vm478 = vcmp.eq.s32.totalorder %v460, %v22
  %vm479 = vcmp.eq.s32.totalorder %v463, %v22
  %vm480 = vcmp.eq.s32.totalorder %v466, %v22
  %vm481 = vcmp.eq.s32.totalorder %v469, %v22
  %vm482 = vcmp.eq.s32.totalorder %v472, %v22
  %v483 = vsel %vm473, 1.0, %v423
  %v484 = vsel %vm474, 1.0, %v424
  %v485 = vsel %vm475, 1.0, %v425
  %v486 = vsel %vm476, 1.0, %v426
  %v487 = vsel %vm477, 1.0, %v427
  %v488 = vsel %vm478, 1.0, %v428
  %v489 = vsel %vm479, 1.0, %v429
  %v490 = vsel %vm480, 1.0, %v430
  %v491 = vsel %vm481, 1.0, %v431
  %v492 = vsel %vm482, 1.0, %v432
  %v493 = vadd.s32 %v11, 64
  %v494 = vadd.s32 %v12, 64
  %v495 = vadd.s32 %v13, 64
  %v496 = vadd.s32 %v14, 64
  %v497 = vadd.s32 %v15, 64
  %v498 = vadd.s32 %v16, 64
  %v499 = vadd.s32 %v17, 64
  %v500 = vadd.s32 %v18, 64
  %v501 = vadd.s32 %v19, 64
  %v502 = vadd.s32 %v20, 64
  %503 = vset.pattern.permute.xlu0 8
  %504 = vperm.xlu0 %503, %v493
  %v505 = vpop.permute.xlu0 %504
  %506 = vset.pattern.permute.xlu0 8
  %507 = vperm.xlu0 %506, %v494
  %v508 = vpop.permute.xlu0 %507
  %509 = vset.pattern.permute.xlu0 8
  %510 = vperm.xlu0 %509, %v495
  %v511 = vpop.permute.xlu0 %510
  %512 = vset.pattern.permute.xlu0 8
  %513 = vperm.xlu0 %512, %v496
  %v514 = vpop.permute.xlu0 %513
  %515 = vset.pattern.permute.xlu0 8
  %516 = vperm.xlu0 %515, %v497
  %v517 = vpop.permute.xlu0 %516
  %518 = vset.pattern.permute.xlu0 8
  %519 = vperm.xlu0 %518, %v498
  %v520 = vpop.permute.xlu0 %519
  %521 = vset.pattern.permute.xlu0 8
  %522 = vperm.xlu0 %521, %v499
  %v523 = vpop.permute.xlu0 %522
  %524 = vset.pattern.permute.xlu0 8
  %525 = vperm.xlu0 %524, %v500
  %v526 = vpop.permute.xlu0 %525
  %527 = vset.pattern.permute.xlu0 8
  %528 = vperm.xlu0 %527, %v501
  %v529 = vpop.permute.xlu0 %528
  %530 = vset.pattern.permute.xlu0 8
  %531 = vperm.xlu0 %530, %v502
  %v532 = vpop.permute.xlu0 %531
  %vm533 = vcmp.eq.s32.totalorder %v505, %v22
  %vm534 = vcmp.eq.s32.totalorder %v508, %v22
  %vm535 = vcmp.eq.s32.totalorder %v511, %v22
  %vm536 = vcmp.eq.s32.totalorder %v514, %v22
  %vm537 = vcmp.eq.s32.totalorder %v517, %v22
  %vm538 = vcmp.eq.s32.totalorder %v520, %v22
  %vm539 = vcmp.eq.s32.totalorder %v523, %v22
  %vm540 = vcmp.eq.s32.totalorder %v526, %v22
  %vm541 = vcmp.eq.s32.totalorder %v529, %v22
  %vm542 = vcmp.eq.s32.totalorder %v532, %v22
  %v543 = vsel %vm533, 1.0, %v483
  %v544 = vsel %vm534, 1.0, %v484
  %v545 = vsel %vm535, 1.0, %v485
  %v546 = vsel %vm536, 1.0, %v486
  %v547 = vsel %vm537, 1.0, %v487
  %v548 = vsel %vm538, 1.0, %v488
  %v549 = vsel %vm539, 1.0, %v489
  %v550 = vsel %vm540, 1.0, %v490
  %v551 = vsel %vm541, 1.0, %v491
  %v552 = vsel %vm542, 1.0, %v492
  %v553 = vadd.s32 %v11, 72
  %v554 = vadd.s32 %v12, 72
  %v555 = vadd.s32 %v13, 72
  %v556 = vadd.s32 %v14, 72
  %v557 = vadd.s32 %v15, 72
  %v558 = vadd.s32 %v16, 72
  %v559 = vadd.s32 %v17, 72
  %v560 = vadd.s32 %v18, 72
  %v561 = vadd.s32 %v19, 72
  %v562 = vadd.s32 %v20, 72
  %563 = vset.pattern.permute.xlu0 9
  %564 = vperm.xlu0 %563, %v553
  %v565 = vpop.permute.xlu0 %564
  %566 = vset.pattern.permute.xlu0 9
  %567 = vperm.xlu0 %566, %v554
  %v568 = vpop.permute.xlu0 %567
  %569 = vset.pattern.permute.xlu0 9
  %570 = vperm.xlu0 %569, %v555
  %v571 = vpop.permute.xlu0 %570
  %572 = vset.pattern.permute.xlu0 9
  %573 = vperm.xlu0 %572, %v556
  %v574 = vpop.permute.xlu0 %573
  %575 = vset.pattern.permute.xlu0 9
  %576 = vperm.xlu0 %575, %v557
  %v577 = vpop.permute.xlu0 %576
  %578 = vset.pattern.permute.xlu0 9
  %579 = vperm.xlu0 %578, %v558
  %v580 = vpop.permute.xlu0 %579
  %581 = vset.pattern.permute.xlu0 9
  %582 = vperm.xlu0 %581, %v559
  %v583 = vpop.permute.xlu0 %582
  %584 = vset.pattern.permute.xlu0 9
  %585 = vperm.xlu0 %584, %v560
  %v586 = vpop.permute.xlu0 %585
  %587 = vset.pattern.permute.xlu0 9
  %588 = vperm.xlu0 %587, %v561
  %v589 = vpop.permute.xlu0 %588
  %590 = vset.pattern.permute.xlu0 9
  %591 = vperm.xlu0 %590, %v562
  %v592 = vpop.permute.xlu0 %591
  %vm593 = vcmp.eq.s32.totalorder %v565, %v22
  %vm594 = vcmp.eq.s32.totalorder %v568, %v22
  %vm595 = vcmp.eq.s32.totalorder %v571, %v22
  %vm596 = vcmp.eq.s32.totalorder %v574, %v22
  %vm597 = vcmp.eq.s32.totalorder %v577, %v22
  %vm598 = vcmp.eq.s32.totalorder %v580, %v22
  %vm599 = vcmp.eq.s32.totalorder %v583, %v22
  %vm600 = vcmp.eq.s32.totalorder %v586, %v22
  %vm601 = vcmp.eq.s32.totalorder %v589, %v22
  %vm602 = vcmp.eq.s32.totalorder %v592, %v22
  %v603 = vsel %vm593, 1.0, %v543
  %v604 = vsel %vm594, 1.0, %v544
  %v605 = vsel %vm595, 1.0, %v545
  %v606 = vsel %vm596, 1.0, %v546
  %v607 = vsel %vm597, 1.0, %v547
  %v608 = vsel %vm598, 1.0, %v548
  %v609 = vsel %vm599, 1.0, %v549
  %v610 = vsel %vm600, 1.0, %v550
  %v611 = vsel %vm601, 1.0, %v551
  %v612 = vsel %vm602, 1.0, %v552
  %v613 = vadd.s32 %v11, 80
  %v614 = vadd.s32 %v12, 80
  %v615 = vadd.s32 %v13, 80
  %v616 = vadd.s32 %v14, 80
  %v617 = vadd.s32 %v15, 80
  %v618 = vadd.s32 %v16, 80
  %v619 = vadd.s32 %v17, 80
  %v620 = vadd.s32 %v18, 80
  %v621 = vadd.s32 %v19, 80
  %v622 = vadd.s32 %v20, 80
  %623 = vset.pattern.permute.xlu0 10
  %624 = vperm.xlu0 %623, %v613
  %v625 = vpop.permute.xlu0 %624
  %626 = vset.pattern.permute.xlu0 10
  %627 = vperm.xlu0 %626, %v614
  %v628 = vpop.permute.xlu0 %627
  %629 = vset.pattern.permute.xlu0 10
  %630 = vperm.xlu0 %629, %v615
  %v631 = vpop.permute.xlu0 %630
  %632 = vset.pattern.permute.xlu0 10
  %633 = vperm.xlu0 %632, %v616
  %v634 = vpop.permute.xlu0 %633
  %635 = vset.pattern.permute.xlu0 10
  %636 = vperm.xlu0 %635, %v617
  %v637 = vpop.permute.xlu0 %636
  %638 = vset.pattern.permute.xlu0 10
  %639 = vperm.xlu0 %638, %v618
  %v640 = vpop.permute.xlu0 %639
  %641 = vset.pattern.permute.xlu0 10
  %642 = vperm.xlu0 %641, %v619
  %v643 = vpop.permute.xlu0 %642
  %644 = vset.pattern.permute.xlu0 10
  %645 = vperm.xlu0 %644, %v620
  %v646 = vpop.permute.xlu0 %645
  %647 = vset.pattern.permute.xlu0 10
  %648 = vperm.xlu0 %647, %v621
  %v649 = vpop.permute.xlu0 %648
  %650 = vset.pattern.permute.xlu0 10
  %651 = vperm.xlu0 %650, %v622
  %v652 = vpop.permute.xlu0 %651
  %vm653 = vcmp.eq.s32.totalorder %v625, %v22
  %vm654 = vcmp.eq.s32.totalorder %v628, %v22
  %vm655 = vcmp.eq.s32.totalorder %v631, %v22
  %vm656 = vcmp.eq.s32.totalorder %v634, %v22
  %vm657 = vcmp.eq.s32.totalorder %v637, %v22
  %vm658 = vcmp.eq.s32.totalorder %v640, %v22
  %vm659 = vcmp.eq.s32.totalorder %v643, %v22
  %vm660 = vcmp.eq.s32.totalorder %v646, %v22
  %vm661 = vcmp.eq.s32.totalorder %v649, %v22
  %vm662 = vcmp.eq.s32.totalorder %v652, %v22
  %v663 = vsel %vm653, 1.0, %v603
  %v664 = vsel %vm654, 1.0, %v604
  %v665 = vsel %vm655, 1.0, %v605
  %v666 = vsel %vm656, 1.0, %v606
  %v667 = vsel %vm657, 1.0, %v607
  %v668 = vsel %vm658, 1.0, %v608
  %v669 = vsel %vm659, 1.0, %v609
  %v670 = vsel %vm660, 1.0, %v610
  %v671 = vsel %vm661, 1.0, %v611
  %v672 = vsel %vm662, 1.0, %v612
  %v673 = vadd.s32 %v11, 88
  %v674 = vadd.s32 %v12, 88
  %v675 = vadd.s32 %v13, 88
  %v676 = vadd.s32 %v14, 88
  %v677 = vadd.s32 %v15, 88
  %v678 = vadd.s32 %v16, 88
  %v679 = vadd.s32 %v17, 88
  %v680 = vadd.s32 %v18, 88
  %v681 = vadd.s32 %v19, 88
  %v682 = vadd.s32 %v20, 88
  %683 = vset.pattern.permute.xlu0 11
  %684 = vperm.xlu0 %683, %v673
  %v685 = vpop.permute.xlu0 %684
  %686 = vset.pattern.permute.xlu0 11
  %687 = vperm.xlu0 %686, %v674
  %v688 = vpop.permute.xlu0 %687
  %689 = vset.pattern.permute.xlu0 11
  %690 = vperm.xlu0 %689, %v675
  %v691 = vpop.permute.xlu0 %690
  %692 = vset.pattern.permute.xlu0 11
  %693 = vperm.xlu0 %692, %v676
  %v694 = vpop.permute.xlu0 %693
  %695 = vset.pattern.permute.xlu0 11
  %696 = vperm.xlu0 %695, %v677
  %v697 = vpop.permute.xlu0 %696
  %698 = vset.pattern.permute.xlu0 11
  %699 = vperm.xlu0 %698, %v678
  %v700 = vpop.permute.xlu0 %699
  %701 = vset.pattern.permute.xlu0 11
  %702 = vperm.xlu0 %701, %v679
  %v703 = vpop.permute.xlu0 %702
  %704 = vset.pattern.permute.xlu0 11
  %705 = vperm.xlu0 %704, %v680
  %v706 = vpop.permute.xlu0 %705
  %707 = vset.pattern.permute.xlu0 11
  %708 = vperm.xlu0 %707, %v681
  %v709 = vpop.permute.xlu0 %708
  %710 = vset.pattern.permute.xlu0 11
  %711 = vperm.xlu0 %710, %v682
  %v712 = vpop.permute.xlu0 %711
  %vm713 = vcmp.eq.s32.totalorder %v685, %v22
  %vm714 = vcmp.eq.s32.totalorder %v688, %v22
  %vm715 = vcmp.eq.s32.totalorder %v691, %v22
  %vm716 = vcmp.eq.s32.totalorder %v694, %v22
  %vm717 = vcmp.eq.s32.totalorder %v697, %v22
  %vm718 = vcmp.eq.s32.totalorder %v700, %v22
  %vm719 = vcmp.eq.s32.totalorder %v703, %v22
  %vm720 = vcmp.eq.s32.totalorder %v706, %v22
  %vm721 = vcmp.eq.s32.totalorder %v709, %v22
  %vm722 = vcmp.eq.s32.totalorder %v712, %v22
  %v723 = vsel %vm713, 1.0, %v663
  %v724 = vsel %vm714, 1.0, %v664
  %v725 = vsel %vm715, 1.0, %v665
  %v726 = vsel %vm716, 1.0, %v666
  %v727 = vsel %vm717, 1.0, %v667
  %v728 = vsel %vm718, 1.0, %v668
  %v729 = vsel %vm719, 1.0, %v669
  %v730 = vsel %vm720, 1.0, %v670
  %v731 = vsel %vm721, 1.0, %v671
  %v732 = vsel %vm722, 1.0, %v672
  %v733 = vadd.s32 %v11, 96
  %v734 = vadd.s32 %v12, 96
  %v735 = vadd.s32 %v13, 96
  %v736 = vadd.s32 %v14, 96
  %v737 = vadd.s32 %v15, 96
  %v738 = vadd.s32 %v16, 96
  %v739 = vadd.s32 %v17, 96
  %v740 = vadd.s32 %v18, 96
  %v741 = vadd.s32 %v19, 96
  %v742 = vadd.s32 %v20, 96
  %743 = vset.pattern.permute.xlu0 12
  %744 = vperm.xlu0 %743, %v733
  %v745 = vpop.permute.xlu0 %744
  %746 = vset.pattern.permute.xlu0 12
  %747 = vperm.xlu0 %746, %v734
  %v748 = vpop.permute.xlu0 %747
  %749 = vset.pattern.permute.xlu0 12
  %750 = vperm.xlu0 %749, %v735
  %v751 = vpop.permute.xlu0 %750
  %752 = vset.pattern.permute.xlu0 12
  %753 = vperm.xlu0 %752, %v736
  %v754 = vpop.permute.xlu0 %753
  %755 = vset.pattern.permute.xlu0 12
  %756 = vperm.xlu0 %755, %v737
  %v757 = vpop.permute.xlu0 %756
  %758 = vset.pattern.permute.xlu0 12
  %759 = vperm.xlu0 %758, %v738
  %v760 = vpop.permute.xlu0 %759
  %761 = vset.pattern.permute.xlu0 12
  %762 = vperm.xlu0 %761, %v739
  %v763 = vpop.permute.xlu0 %762
  %764 = vset.pattern.permute.xlu0 12
  %765 = vperm.xlu0 %764, %v740
  %v766 = vpop.permute.xlu0 %765
  %767 = vset.pattern.permute.xlu0 12
  %768 = vperm.xlu0 %767, %v741
  %v769 = vpop.permute.xlu0 %768
  %770 = vset.pattern.permute.xlu0 12
  %771 = vperm.xlu0 %770, %v742
  %v772 = vpop.permute.xlu0 %771
  %vm773 = vcmp.eq.s32.totalorder %v745, %v22
  %vm774 = vcmp.eq.s32.totalorder %v748, %v22
  %vm775 = vcmp.eq.s32.totalorder %v751, %v22
  %vm776 = vcmp.eq.s32.totalorder %v754, %v22
  %vm777 = vcmp.eq.s32.totalorder %v757, %v22
  %vm778 = vcmp.eq.s32.totalorder %v760, %v22
  %vm779 = vcmp.eq.s32.totalorder %v763, %v22
  %vm780 = vcmp.eq.s32.totalorder %v766, %v22
  %vm781 = vcmp.eq.s32.totalorder %v769, %v22
  %vm782 = vcmp.eq.s32.totalorder %v772, %v22
  %v783 = vsel %vm773, 1.0, %v723
  %v784 = vsel %vm774, 1.0, %v724
  %v785 = vsel %vm775, 1.0, %v725
  %v786 = vsel %vm776, 1.0, %v726
  %v787 = vsel %vm777, 1.0, %v727
  %v788 = vsel %vm778, 1.0, %v728
  %v789 = vsel %vm779, 1.0, %v729
  %v790 = vsel %vm780, 1.0, %v730
  %v791 = vsel %vm781, 1.0, %v731
  %v792 = vsel %vm782, 1.0, %v732
  %v793 = vadd.s32 %v11, 104
  %v794 = vadd.s32 %v12, 104
  %v795 = vadd.s32 %v13, 104
  %v796 = vadd.s32 %v14, 104
  %v797 = vadd.s32 %v15, 104
  %v798 = vadd.s32 %v16, 104
  %v799 = vadd.s32 %v17, 104
  %v800 = vadd.s32 %v18, 104
  %v801 = vadd.s32 %v19, 104
  %v802 = vadd.s32 %v20, 104
  %803 = vset.pattern.permute.xlu0 13
  %804 = vperm.xlu0 %803, %v793
  %v805 = vpop.permute.xlu0 %804
  %806 = vset.pattern.permute.xlu0 13
  %807 = vperm.xlu0 %806, %v794
  %v808 = vpop.permute.xlu0 %807
  %809 = vset.pattern.permute.xlu0 13
  %810 = vperm.xlu0 %809, %v795
  %v811 = vpop.permute.xlu0 %810
  %812 = vset.pattern.permute.xlu0 13
  %813 = vperm.xlu0 %812, %v796
  %v814 = vpop.permute.xlu0 %813
  %815 = vset.pattern.permute.xlu0 13
  %816 = vperm.xlu0 %815, %v797
  %v817 = vpop.permute.xlu0 %816
  %818 = vset.pattern.permute.xlu0 13
  %819 = vperm.xlu0 %818, %v798
  %v820 = vpop.permute.xlu0 %819
  %821 = vset.pattern.permute.xlu0 13
  %822 = vperm.xlu0 %821, %v799
  %v823 = vpop.permute.xlu0 %822
  %824 = vset.pattern.permute.xlu0 13
  %825 = vperm.xlu0 %824, %v800
  %v826 = vpop.permute.xlu0 %825
  %827 = vset.pattern.permute.xlu0 13
  %828 = vperm.xlu0 %827, %v801
  %v829 = vpop.permute.xlu0 %828
  %830 = vset.pattern.permute.xlu0 13
  %831 = vperm.xlu0 %830, %v802
  %v832 = vpop.permute.xlu0 %831
  %vm833 = vcmp.eq.s32.totalorder %v805, %v22
  %vm834 = vcmp.eq.s32.totalorder %v808, %v22
  %vm835 = vcmp.eq.s32.totalorder %v811, %v22
  %vm836 = vcmp.eq.s32.totalorder %v814, %v22
  %vm837 = vcmp.eq.s32.totalorder %v817, %v22
  %vm838 = vcmp.eq.s32.totalorder %v820, %v22
  %vm839 = vcmp.eq.s32.totalorder %v823, %v22
  %vm840 = vcmp.eq.s32.totalorder %v826, %v22
  %vm841 = vcmp.eq.s32.totalorder %v829, %v22
  %vm842 = vcmp.eq.s32.totalorder %v832, %v22
  %v843 = vsel %vm833, 1.0, %v783
  %v844 = vsel %vm834, 1.0, %v784
  %v845 = vsel %vm835, 1.0, %v785
  %v846 = vsel %vm836, 1.0, %v786
  %v847 = vsel %vm837, 1.0, %v787
  %v848 = vsel %vm838, 1.0, %v788
  %v849 = vsel %vm839, 1.0, %v789
  %v850 = vsel %vm840, 1.0, %v790
  %v851 = vsel %vm841, 1.0, %v791
  %v852 = vsel %vm842, 1.0, %v792
  %v853 = vadd.s32 %v11, 112
  %v854 = vadd.s32 %v12, 112
  %v855 = vadd.s32 %v13, 112
  %v856 = vadd.s32 %v14, 112
  %v857 = vadd.s32 %v15, 112
  %v858 = vadd.s32 %v16, 112
  %v859 = vadd.s32 %v17, 112
  %v860 = vadd.s32 %v18, 112
  %v861 = vadd.s32 %v19, 112
  %v862 = vadd.s32 %v20, 112
  %863 = vset.pattern.permute.xlu0 14
  %864 = vperm.xlu0 %863, %v853
  %v865 = vpop.permute.xlu0 %864
  %866 = vset.pattern.permute.xlu0 14
  %867 = vperm.xlu0 %866, %v854
  %v868 = vpop.permute.xlu0 %867
  %869 = vset.pattern.permute.xlu0 14
  %870 = vperm.xlu0 %869, %v855
  %v871 = vpop.permute.xlu0 %870
  %872 = vset.pattern.permute.xlu0 14
  %873 = vperm.xlu0 %872, %v856
  %v874 = vpop.permute.xlu0 %873
  %875 = vset.pattern.permute.xlu0 14
  %876 = vperm.xlu0 %875, %v857
  %v877 = vpop.permute.xlu0 %876
  %878 = vset.pattern.permute.xlu0 14
  %879 = vperm.xlu0 %878, %v858
  %v880 = vpop.permute.xlu0 %879
  %881 = vset.pattern.permute.xlu0 14
  %882 = vperm.xlu0 %881, %v859
  %v883 = vpop.permute.xlu0 %882
  %884 = vset.pattern.permute.xlu0 14
  %885 = vperm.xlu0 %884, %v860
  %v886 = vpop.permute.xlu0 %885
  %887 = vset.pattern.permute.xlu0 14
  %888 = vperm.xlu0 %887, %v861
  %v889 = vpop.permute.xlu0 %888
  %890 = vset.pattern.permute.xlu0 14
  %891 = vperm.xlu0 %890, %v862
  %v892 = vpop.permute.xlu0 %891
  %vm893 = vcmp.eq.s32.totalorder %v865, %v22
  %vm894 = vcmp.eq.s32.totalorder %v868, %v22
  %vm895 = vcmp.eq.s32.totalorder %v871, %v22
  %vm896 = vcmp.eq.s32.totalorder %v874, %v22
  %vm897 = vcmp.eq.s32.totalorder %v877, %v22
  %vm898 = vcmp.eq.s32.totalorder %v880, %v22
  %vm899 = vcmp.eq.s32.totalorder %v883, %v22
  %vm900 = vcmp.eq.s32.totalorder %v886, %v22
  %vm901 = vcmp.eq.s32.totalorder %v889, %v22
  %vm902 = vcmp.eq.s32.totalorder %v892, %v22
  %v903 = vsel %vm893, 1.0, %v843
  %v904 = vsel %vm894, 1.0, %v844
  %v905 = vsel %vm895, 1.0, %v845
  %v906 = vsel %vm896, 1.0, %v846
  %v907 = vsel %vm897, 1.0, %v847
  %v908 = vsel %vm898, 1.0, %v848
  %v909 = vsel %vm899, 1.0, %v849
  %v910 = vsel %vm900, 1.0, %v850
  %v911 = vsel %vm901, 1.0, %v851
  %v912 = vsel %vm902, 1.0, %v852
  %v913 = vadd.s32 %v11, 120
  %v914 = vadd.s32 %v12, 120
  %v915 = vadd.s32 %v13, 120
  %v916 = vadd.s32 %v14, 120
  %v917 = vadd.s32 %v15, 120
  %v918 = vadd.s32 %v16, 120
  %v919 = vadd.s32 %v17, 120
  %v920 = vadd.s32 %v18, 120
  %v921 = vadd.s32 %v19, 120
  %v922 = vadd.s32 %v20, 120
  %923 = vset.pattern.permute.xlu0 15
  %924 = vperm.xlu0 %923, %v913
  %v925 = vpop.permute.xlu0 %924
  %926 = vset.pattern.permute.xlu0 15
  %927 = vperm.xlu0 %926, %v914
  %v928 = vpop.permute.xlu0 %927
  %929 = vset.pattern.permute.xlu0 15
  %930 = vperm.xlu0 %929, %v915
  %v931 = vpop.permute.xlu0 %930
  %932 = vset.pattern.permute.xlu0 15
  %933 = vperm.xlu0 %932, %v916
  %v934 = vpop.permute.xlu0 %933
  %935 = vset.pattern.permute.xlu0 15
  %936 = vperm.xlu0 %935, %v917
  %v937 = vpop.permute.xlu0 %936
  %938 = vset.pattern.permute.xlu0 15
  %939 = vperm.xlu0 %938, %v918
  %v940 = vpop.permute.xlu0 %939
  %941 = vset.pattern.permute.xlu0 15
  %942 = vperm.xlu0 %941, %v919
  %v943 = vpop.permute.xlu0 %942
  %944 = vset.pattern.permute.xlu0 15
  %945 = vperm.xlu0 %944, %v920
  %v946 = vpop.permute.xlu0 %945
  %947 = vset.pattern.permute.xlu0 15
  %948 = vperm.xlu0 %947, %v921
  %v949 = vpop.permute.xlu0 %948
  %950 = vset.pattern.permute.xlu0 15
  %951 = vperm.xlu0 %950, %v922
  %v952 = vpop.permute.xlu0 %951
  %vm953 = vcmp.eq.s32.totalorder %v925, %v22
  %vm954 = vcmp.eq.s32.totalorder %v928, %v22
  %vm955 = vcmp.eq.s32.totalorder %v931, %v22
  %vm956 = vcmp.eq.s32.totalorder %v934, %v22
  %vm957 = vcmp.eq.s32.totalorder %v937, %v22
  %vm958 = vcmp.eq.s32.totalorder %v940, %v22
  %vm959 = vcmp.eq.s32.totalorder %v943, %v22
  %vm960 = vcmp.eq.s32.totalorder %v946, %v22
  %vm961 = vcmp.eq.s32.totalorder %v949, %v22
  %vm962 = vcmp.eq.s32.totalorder %v952, %v22
  %v963 = vsel %vm953, 1.0, %v903
  %v964 = vsel %vm954, 1.0, %v904
  %v965 = vsel %vm955, 1.0, %v905
  %v966 = vsel %vm956, 1.0, %v906
  %v967 = vsel %vm957, 1.0, %v907
  %v968 = vsel %vm958, 1.0, %v908
  %v969 = vsel %vm959, 1.0, %v909
  %v970 = vsel %vm960, 1.0, %v910
  %v971 = vsel %vm961, 1.0, %v911
  %v972 = vsel %vm962, 1.0, %v912
  %v973 = vld [vmem:[%s1] sm:$0xff]
  %v974 = vld [vmem:[%s1 + $0x8] sm:$0xff]
  %v975 = vld [vmem:[%s1 + $0x10] sm:$0xff]
  %v976 = vld [vmem:[%s1 + $0x18] sm:$0xff]
  %v977 = vld [vmem:[%s1 + $0x20] sm:$0xff]
  %v978 = vld [vmem:[%s1 + $0x28] sm:$0xff]
  %v979 = vld [vmem:[%s1 + $0x30] sm:$0xff]
  %v980 = vld [vmem:[%s1 + $0x38] sm:$0xff]
  %v981 = vld [vmem:[%s1 + $0x40] sm:$0xff]
  %v982 = vld [vmem:[%s1 + $0x48] sm:$0xff]
  %v983 = vld [vmem:[%s1 + $0x50] sm:$0xff]
  %v984 = vld [vmem:[%s1 + $0x58] sm:$0xff]
  %v985 = vld [vmem:[%s1 + $0x60] sm:$0xff]
  %v986 = vld [vmem:[%s1 + $0x68] sm:$0xff]
  %v987 = vld [vmem:[%s1 + $0x70] sm:$0xff]
  %v988 = vld [vmem:[%s1 + $0x78] sm:$0xff]
  %989 = vmatprep.subr.mxu0 0.0
  %990 = vmatpush1.msra.mxu0 %v988
  %991 = vmatprep.subr.mxu0 0.0
  %992 = vmatpush1.msra.mxu0 %v987
  %993 = vmatprep.subr.mxu0 0.0
  %994 = vmatpush1.msra.mxu0 %v986
  %995 = vmatprep.subr.mxu0 0.0
  %996 = vmatpush1.msra.mxu0 %v985
  %997 = vmatprep.subr.mxu0 0.0
  %998 = vmatpush1.msra.mxu0 %v984
  %999 = vmatprep.subr.mxu0 0.0
  %1000 = vmatpush1.msra.mxu0 %v983
  %1001 = vmatprep.subr.mxu0 0.0
  %1002 = vmatpush1.msra.mxu0 %v982
  %1003 = vmatprep.subr.mxu0 0.0
  %1004 = vmatpush1.msra.mxu0 %v981
  %1005 = vmatprep.subr.mxu0 0.0
  %1006 = vmatpush1.msra.mxu0 %v980
  %1007 = vmatprep.subr.mxu0 0.0
  %1008 = vmatpush1.msra.mxu0 %v979
  %1009 = vmatprep.subr.mxu0 0.0
  %1010 = vmatpush1.msra.mxu0 %v978
  %1011 = vmatprep.subr.mxu0 0.0
  %1012 = vmatpush1.msra.mxu0 %v977
  %1013 = vmatprep.subr.mxu0 0.0
  %1014 = vmatpush1.msra.mxu0 %v976
  %1015 = vmatprep.subr.mxu0 0.0
  %1016 = vmatpush1.msra.mxu0 %v975
  %1017 = vmatprep.subr.mxu0 0.0
  %1018 = vmatpush1.msra.mxu0 %v974
  %1019 = vmatprep.subr.mxu0 0.0
  %1020 = vmatpush1.msra.mxu0 %v973
  %1021 = vmatprep.subr.mxu0 0.0
  %1022 = vmatpush2.msra.mxu0 0.0
  %1023 = vmatprep.subr.mxu0 0.0
  %1024 = vmatpush2.msra.mxu0 0.0
  %1025 = vmatprep.subr.mxu0 0.0
  %1026 = vmatpush2.msra.mxu0 0.0
  %1027 = vmatprep.subr.mxu0 0.0
  %1028 = vmatpush2.msra.mxu0 0.0
  %1029 = vmatprep.subr.mxu0 0.0
  %1030 = vmatpush2.msra.mxu0 0.0
  %1031 = vmatprep.subr.mxu0 0.0
  %1032 = vmatpush2.msra.mxu0 0.0
  %1033 = vmatprep.subr.mxu0 0.0
  %1034 = vmatpush2.msra.mxu0 0.0
  %1035 = vmatprep.subr.mxu0 0.0
  %1036 = vmatpush2.msra.mxu0 0.0
  %1037 = vmatprep.subr.mxu0 0.0
  %1038 = vmatpush2.msra.mxu0 0.0
  %1039 = vmatprep.subr.mxu0 0.0
  %1040 = vmatpush2.msra.mxu0 0.0
  %1041 = vmatprep.subr.mxu0 0.0
  %1042 = vmatpush2.msra.mxu0 0.0
  %1043 = vmatprep.subr.mxu0 0.0
  %1044 = vmatpush2.msra.mxu0 0.0
  %1045 = vmatprep.subr.mxu0 0.0
  %1046 = vmatpush2.msra.mxu0 0.0
  %1047 = vmatprep.subr.mxu0 0.0
  %1048 = vmatpush2.msra.mxu0 0.0
  %1049 = vmatprep.subr.mxu0 0.0
  %1050 = vmatpush2.msra.mxu0 0.0
  %1051 = vmatprep.subr.mxu0 0.0
  %1052 = vmatpush2.msra.mxu0 0.0
  %1053 = vmatprep.mubr.f32.mxu0 0.0
  %1054 = vmatmul.mubr.f32.gmra.mxu0 %v963
  %v1055 = vpop.f32.mrf.mxu0
  %v1056 = vadd.f32 0.0, %v1055
  %v1057 = vpop.f32.mrf.mxu0
  %1058 = vmatprep.mubr.f32.mxu0 0.0
  %1059 = vmatmul.mubr.f32.gmra.mxu0 %v964
  %v1060 = vpop.f32.mrf.mxu0
  %v1061 = vadd.f32 0.0, %v1060
  %v1062 = vpop.f32.mrf.mxu0
  %1063 = vmatprep.mubr.f32.mxu0 0.0
  %1064 = vmatmul.mubr.f32.gmra.mxu0 %v965
  %v1065 = vpop.f32.mrf.mxu0
  %v1066 = vadd.f32 0.0, %v1065
  %v1067 = vpop.f32.mrf.mxu0
  %1068 = vmatprep.mubr.f32.mxu0 0.0
  %1069 = vmatmul.mubr.f32.gmra.mxu0 %v966
  %v1070 = vpop.f32.mrf.mxu0
  %v1071 = vadd.f32 0.0, %v1070
  %v1072 = vpop.f32.mrf.mxu0
  %1073 = vmatprep.mubr.f32.mxu0 0.0
  %1074 = vmatmul.mubr.f32.gmra.mxu0 %v967
  %v1075 = vpop.f32.mrf.mxu0
  %v1076 = vadd.f32 0.0, %v1075
  %v1077 = vpop.f32.mrf.mxu0
  %1078 = vmatprep.mubr.f32.mxu0 0.0
  %1079 = vmatmul.mubr.f32.gmra.mxu0 %v968
  %v1080 = vpop.f32.mrf.mxu0
  %v1081 = vadd.f32 0.0, %v1080
  %v1082 = vpop.f32.mrf.mxu0
  %1083 = vmatprep.mubr.f32.mxu0 0.0
  %1084 = vmatmul.mubr.f32.gmra.mxu0 %v969
  %v1085 = vpop.f32.mrf.mxu0
  %v1086 = vadd.f32 0.0, %v1085
  %v1087 = vpop.f32.mrf.mxu0
  %1088 = vmatprep.mubr.f32.mxu0 0.0
  %1089 = vmatmul.mubr.f32.gmra.mxu0 %v970
  %v1090 = vpop.f32.mrf.mxu0
  %v1091 = vadd.f32 0.0, %v1090
  %v1092 = vpop.f32.mrf.mxu0
  %1093 = vmatprep.mubr.f32.mxu0 0.0
  %1094 = vmatmul.mubr.f32.gmra.mxu0 %v971
  %v1095 = vpop.f32.mrf.mxu0
  %v1096 = vadd.f32 0.0, %v1095
  %v1097 = vpop.f32.mrf.mxu0
  %1098 = vmatprep.mubr.f32.mxu0 0.0
  %1099 = vmatmul.mubr.f32.gmra.mxu0 %v972
  %v1100 = vpop.f32.mrf.mxu0
  %v1101 = vadd.f32 0.0, %v1100
  %v1102 = vpop.f32.mrf.mxu0
  %1103 = vdwg.mxu0
  %1104 = vst [vmem:[%s2] sm:$0xff] %v1056
  %1105 = vst [vmem:[%s2 + $0x8] sm:$0xff] %v1061
  %1106 = vst [vmem:[%s2 + $0x10] sm:$0xff] %v1066
  %1107 = vst [vmem:[%s2 + $0x18] sm:$0xff] %v1071
  %1108 = vst [vmem:[%s2 + $0x20] sm:$0xff] %v1076
  %1109 = vst [vmem:[%s2 + $0x28] sm:$0xff] %v1081
  %1110 = vst [vmem:[%s2 + $0x30] sm:$0xff] %v1086
  %1111 = vst [vmem:[%s2 + $0x38] sm:$0xff] %v1091
  %1112 = vst [vmem:[%s2 + $0x40] sm:$0xff] %v1096
  %1113 = vst [vmem:[%s2 + $0x48] sm:$0xff] %v1101
  // Predicated region
  $region10: #{bond_embedding_forward.1} parent=0 // pred_check
    _
  $region11: #{bond_embedding_forward.1} parent=0 // pred_check_branch
    %1115 = sbr.rel (0) target = $region13
  $region12: #{bond_embedding_forward.1} parent=0 // pred_region
    _
  $region13: #{bond_embedding_forward.1} parent=0 // pred_fallthru
    _
  // Predicated region
  $region14: #{bond_embedding_forward.1} parent=0 // pred_check
    _
  $region15: #{bond_embedding_forward.1} parent=0 // pred_check_branch
    %1117 = sbr.rel (0) target = $region17
  $region16: #{bond_embedding_forward.1} parent=0 // pred_region
    _
  $region17: #{bond_embedding_forward.1} parent=0 // pred_fallthru
    _

</llo_original>
